<compile_context>
chip_gen: v5e
topology: v5e:2x2
jax: 0.10.0
libtpu: 0.0.40
codegen_flags: <defaults>
</compile_context>

<pallas_src>
import jax
import jax.numpy as jnp
from jax.experimental import pallas as pl
from jax.experimental.pallas import tpu as pltpu

LN_EPS = 1e-5  # config.layer_norm_epsilon default

_MIB = 1024 * 1024


def _round_up(n, m):
    return ((n + m - 1) // m) * m


def _vmem_capacity_bytes():
    """Per-core VMEM capacity (128 MiB v5e/v6e, 64 MiB v7x); safe fallback."""
    try:
        return int(pltpu.get_tpu_info().vmem_capacity_bytes)
    except Exception:
        return 64 * _MIB  # conservative (v7x-sized) fallback


def _vmem_need_bytes(tm, nx, bneck_p, x_bytes, w_bytes, *, weight_bufs, x_bufs,
                     out_bufs=2):
    """Rough working-set estimate used for tile sizing."""
    io = (x_bufs + out_bufs) * tm * nx * x_bytes        # x tile + out tile buffers
    wts = weight_bufs * 2 * nx * bneck_p * w_bytes      # Wd_eff + Wu
    vecs = weight_bufs * (nx + bneck_p) * 4             # bd_eff + bu (f32)
    tmp = tm * (2 * nx * 4 + bneck_p * 4)               # f32 temporaries (x, y, h)
    return io + wts + vecs + tmp


def prepare_adapter_params(gamma, beta, wd, bd, wu, bu, *, use_bf16_matmul=True):
    """One-time parameter prep: fold LN affine into Wd, pad bottleneck to 128,
    cast matmul operands to bf16 (f32 accumulation happens in the kernel)."""
    nx, bneck = wd.shape
    w_dtype = jnp.bfloat16 if use_bf16_matmul else jnp.float32

    gamma = gamma.astype(jnp.float32)
    beta = beta.astype(jnp.float32)
    wd32 = wd.astype(jnp.float32)
    wu32 = wu.astype(jnp.float32)

    # Exact algebra: LN(x) @ Wd + bd == ((x-mu)/sigma) @ (gamma[:,None]*Wd)
    #                                   + (beta @ Wd + bd)
    wd_eff = gamma[:, None] * wd32                       # (nx, bneck), f32
    bd_eff = bd.astype(jnp.float32) + beta @ wd32        # (bneck,),    f32

    # Zero-pad bottleneck to a lane-dense multiple of 128 (exact: padded
    # columns of Wd_eff / rows of Wu are zero, relu(0)=0 contributes nothing).
    bneck_p = max(128, _round_up(bneck, 128))
    if bneck_p != bneck:
        pad = bneck_p - bneck
        wd_eff = jnp.pad(wd_eff, ((0, 0), (0, pad)))
        bd_eff = jnp.pad(bd_eff, (0, pad))
        wu32 = jnp.pad(wu32, ((0, pad), (0, 0)))

    return dict(
        wd=wd_eff.astype(w_dtype),                       # (nx, bneck_p)
        bd=bd_eff.reshape(1, bneck_p),                   # (1, bneck_p) f32
        wu=wu32.astype(w_dtype),                         # (bneck_p, nx)
        bu=bu.astype(jnp.float32).reshape(1, nx),        # (1, nx) f32
        nx=nx,
        bneck_p=bneck_p,
        w_dtype=w_dtype,
    )


def _make_adapter_kernel(use_bf16_matmul, tm, grid, rem):
    mx_dtype = jnp.bfloat16 if use_bf16_matmul else jnp.float32

    def kernel(x_ref, wd_ref, bd_ref, wu_ref, bu_ref, o_ref):
        """y = x + relu(LN_nogain(x) @ Wd_eff + bd_eff) @ Wu + bu, per tile."""
        x = x_ref[...].astype(jnp.float32)               # (tm, nx)

        if rem:
            # Static specialization: only emitted when tokens % tm != 0.
            # Zero the out-of-bounds tail rows of the last tile so all math
            # stays finite; their output rows are dropped by the masked store
            # Pallas generates for the partial block anyway.
            row = jax.lax.broadcasted_iota(jnp.int32, (tm, 1), 0)
            in_bounds = jnp.logical_or(pl.program_id(0) != grid - 1, row < rem)
            x = jnp.where(in_bounds, x, 0.0)

        # LayerNorm core (affine already folded into Wd_eff / bd_eff).
        mean = jnp.mean(x, axis=-1, keepdims=True)
        cent = x - mean
        var = jnp.mean(cent * cent, axis=-1, keepdims=True)
        inv_std = jax.lax.rsqrt(var + LN_EPS)            # EUP
        xn = (cent * inv_std).astype(mx_dtype)           # single fused mul+cast

        # project_down + ReLU (bf16 MXU operands, f32 accumulation)
        h = jnp.dot(xn, wd_ref[...], preferred_element_type=jnp.float32)
        h = jnp.maximum(h + bd_ref[...], 0.0).astype(mx_dtype)  # (tm, bneck_p)

        # project_up + bias + residual (pre-LN x)
        y = jnp.dot(h, wu_ref[...], preferred_element_type=jnp.float32)
        o_ref[...] = (x + y + bu_ref[...]).astype(o_ref.dtype)

    return kernel


def _run(x2, wd, bd, wu, bu, *, kernel, tm, grid, nx, bneck_p, tokens,
         out_dtype, x_buffers, vmem_limit, cost, use_pipeline_modes):
    def wspec(shape):
        if use_pipeline_modes:
            # Constant index_map -> resident block; one buffer is enough.
            return pl.BlockSpec(shape, lambda i: (0, 0),
                                pipeline_mode=pl.Buffered(1))
        return pl.BlockSpec(shape, lambda i: (0, 0))

    if use_pipeline_modes and x_buffers != 2:
        x_spec = pl.BlockSpec((tm, nx), lambda i: (i, 0),
                              pipeline_mode=pl.Buffered(x_buffers))
    else:
        x_spec = pl.BlockSpec((tm, nx), lambda i: (i, 0))

    return pl.pallas_call(
        kernel,
        out_shape=jax.ShapeDtypeStruct((tokens, nx), out_dtype),
        grid_spec=pltpu.PrefetchScalarGridSpec(
            num_scalar_prefetch=0,
            grid=(grid,),
            in_specs=[
                x_spec,                       # x tile (pipelined)
                wspec((nx, bneck_p)),         # Wd_eff (resident)
                wspec((1, bneck_p)),          # bd_eff (resident)
                wspec((bneck_p, nx)),         # Wu     (resident)
                wspec((1, nx)),               # bu     (resident)
            ],
            out_specs=pl.BlockSpec((tm, nx), lambda i: (i, 0)),
        ),
        compiler_params=pltpu.CompilerParams(
            dimension_semantics=("parallel",),   # token axis shards across TCs
            vmem_limit_bytes=vmem_limit,
        ),
        cost_estimate=cost,
    )(x2, wd, bd, wu, bu)


def adapter_forward(x, params, *, tm=None, target_tile_bytes=4 * _MIB,
                    min_grid=4, x_buffers=2):
    """x: (B, S, nx); params from prepare_adapter_params(). Returns x.shape/x.dtype."""
    B, S, nx = x.shape
    assert nx == params["nx"]
    bneck_p = params["bneck_p"]
    tokens = B * S

    x_bytes = jnp.dtype(x.dtype).itemsize
    w_bytes = jnp.dtype(params["w_dtype"]).itemsize
    align = 16 if x_bytes == 2 else 8            # sublane-packed bf16 -> 16 rows

    cap = _vmem_capacity_bytes()
    budget = int(0.70 * cap)                     # generation-aware working set

    # Token tile: size by bytes (~target_tile_bytes per x tile), cap it so the
    # parallel grid keeps >= min_grid steps (feeds both v7x TensorCores), and
    # shrink until the working set fits the budget.  The budget assumes
    # double-buffered weights so the no-pipeline_mode fallback also fits.
    if tm is None:
        tm = max(align, (target_tile_bytes // (nx * x_bytes)) // align * align)
    tm_eff = min(tm, _round_up(pl.cdiv(tokens, min_grid), align))
    tm_eff = max(align, tm_eff - tm_eff % align)
    while tm_eff > align and _vmem_need_bytes(
            tm_eff, nx, bneck_p, x_bytes, w_bytes,
            weight_bufs=2, x_bufs=max(2, x_buffers)) > budget:
        tm_eff = max(align, (tm_eff // 2) // align * align)

    grid = pl.cdiv(tokens, tm_eff)
    rem = tokens % tm_eff                        # static remainder, masked in-kernel

    x2 = x.reshape(tokens, nx)                   # no padding: zero extra HBM passes

    need = _vmem_need_bytes(tm_eff, nx, bneck_p, x_bytes, w_bytes,
                            weight_bufs=2, x_bufs=max(2, x_buffers))
    vmem_limit = int(min(0.85 * cap, max(32 * _MIB, int(1.25 * need))))

    cost = pl.CostEstimate(
        flops=4 * tokens * nx * bneck_p,                 # two GEMMs: 2*M*N*K each
        transcendentals=tokens,                          # one rsqrt per row
        bytes_accessed=2 * tokens * nx * x_bytes + 2 * nx * bneck_p * w_bytes,
    )

    kernel = _make_adapter_kernel(params["w_dtype"] == jnp.bfloat16,
                                  tm_eff, grid, rem)
    run_kwargs = dict(kernel=kernel, tm=tm_eff, grid=grid, nx=nx,
                      bneck_p=bneck_p, tokens=tokens, out_dtype=x.dtype,
                      x_buffers=x_buffers, vmem_limit=vmem_limit, cost=cost)
    try:
        out2 = _run(x2, params["wd"], params["bd"], params["wu"], params["bu"],
                    use_pipeline_modes=True, **run_kwargs)
    except Exception:
        # Fallback for JAX builds that reject pipeline_mode=pl.Buffered on
        # pallas_call BlockSpecs.  tm was budgeted for double-buffered weights,
        # so this path needs strictly LESS VMEM than the primary attempt; a
        # genuine resource/compile error will therefore recur here and
        # propagate instead of being masked.
        out2 = _run(x2, params["wd"], params["bd"], params["wu"], params["bu"],
                    use_pipeline_modes=False, **run_kwargs)

    return out2.reshape(B, S, nx)


def adapter_reference(x, gamma, beta, wd, bd, wu, bu):
    xf = x.astype(jnp.float32)
    mean = jnp.mean(xf, axis=-1, keepdims=True)
    var = jnp.mean((xf - mean) ** 2, axis=-1, keepdims=True)
    xn = (xf - mean) / jnp.sqrt(var + LN_EPS) * gamma + beta
    h = jnp.maximum(xn @ wd + bd, 0.0)
    y = h @ wu + bu
    return (xf + y).astype(x.dtype)


if __name__ == "__main__":
    # Small shapes consistent with the module: n_embd=32, bottleneck=16,
    # batch=2, seq=8.
    B, S, NX, BOTTLENECK = 2, 8, 32, 16

    key = jax.random.PRNGKey(0)
    kx, kg, kb, kwd, kbd, kwu, kbu = jax.random.split(key, 7)

    x = jax.random.normal(kx, (B, S, NX), dtype=jnp.float32)

    # Deterministic synthetic parameters (shapes from Adapter.__init__).
    gamma = 1.0 + 0.01 * jax.random.normal(kg, (NX,), dtype=jnp.float32)
    beta = 0.01 * jax.random.normal(kb, (NX,), dtype=jnp.float32)
    wd = 0.1 * jax.random.normal(kwd, (NX, BOTTLENECK), dtype=jnp.float32)
    bd = 0.01 * jax.random.normal(kbd, (BOTTLENECK,), dtype=jnp.float32)
    wu = 0.1 * jax.random.normal(kwu, (BOTTLENECK, NX), dtype=jnp.float32)
    bu = 0.01 * jax.random.normal(kbu, (NX,), dtype=jnp.float32)

    # One-time parameter prep (LN-affine fold, bottleneck pad, bf16 cast).
    params = prepare_adapter_params(gamma, beta, wd, bd, wu, bu,
                                    use_bf16_matmul=True)

    out = adapter_forward(x, params)
    jax.block_until_ready(out)

    ref = adapter_reference(x, gamma, beta, wd, bd, wu, bu)
    # bf16 MXU operands with f32 accumulation -> slightly looser tolerance.
    assert out.shape == ref.shape and out.dtype == ref.dtype
    assert jnp.allclose(out, ref, atol=2e-2, rtol=2e-2), "mismatch vs reference"

    print("KERNEL_OK")
</pallas_src>

<mosaic_0001>
module attributes {stable_mosaic.version = 11 : i64} {
  func.func @kernel(%arg0: i32, %arg1: memref<8x32xf32, #tpu.memory_space<vmem>>, %arg2: memref<32x128xbf16, #tpu.memory_space<vmem>>, %arg3: memref<1x128xf32, #tpu.memory_space<vmem>>, %arg4: memref<128x32xbf16, #tpu.memory_space<vmem>>, %arg5: memref<1x32xf32, #tpu.memory_space<vmem>>, %arg6: memref<8x32xf32, #tpu.memory_space<vmem>>) attributes {dimension_semantics = [#tpu.dimension_semantics<parallel>], iteration_bounds = array<i64: 2>, scalar_prefetch = 0 : i64, scratch_operands = 0 : i64, tpu.core_type = #tpu.core_type<tc>, window_params = [{transform_indices = @transform_0, window_bounds = array<i64: 8, 32>}, {pipeline_mode = #tpu.pipeline_mode<synchronous>, transform_indices = @transform_1, window_bounds = array<i64: 32, 128>}, {pipeline_mode = #tpu.pipeline_mode<synchronous>, transform_indices = @transform_2, window_bounds = array<i64: 1, 128>}, {pipeline_mode = #tpu.pipeline_mode<synchronous>, transform_indices = @transform_3, window_bounds = array<i64: 128, 32>}, {pipeline_mode = #tpu.pipeline_mode<synchronous>, transform_indices = @transform_4, window_bounds = array<i64: 1, 32>}, {transform_indices = @transform_5, window_bounds = array<i64: 8, 32>}]} {
    %c0 = arith.constant 0 : index
    %c0_0 = arith.constant 0 : index
    %0 = vector.load %arg1[%c0, %c0_0] : memref<8x32xf32, #tpu.memory_space<vmem>>, vector<8x32xf32>
    %cst = arith.constant dense<0.000000e+00> : vector<8xf32>
    %1 = vector.multi_reduction <add>, %0, %cst [1] : vector<8x32xf32> to vector<8xf32>
    %2 = vector.shape_cast %1 : vector<8xf32> to vector<8x1xf32>
    %cst_1 = arith.constant 3.200000e+01 : f32
    %3 = vector.broadcast %cst_1 : f32 to vector<8x1xf32>
    %4 = arith.divf %2, %3 : vector<8x1xf32>
    %5 = vector.broadcast %4 : vector<8x1xf32> to vector<8x32xf32>
    %6 = arith.subf %0, %5 : vector<8x32xf32>
    %7 = arith.mulf %6, %6 : vector<8x32xf32>
    %cst_2 = arith.constant dense<0.000000e+00> : vector<8xf32>
    %8 = vector.multi_reduction <add>, %7, %cst_2 [1] : vector<8x32xf32> to vector<8xf32>
    %9 = vector.shape_cast %8 : vector<8xf32> to vector<8x1xf32>
    %cst_3 = arith.constant 3.200000e+01 : f32
    %10 = vector.broadcast %cst_3 : f32 to vector<8x1xf32>
    %11 = arith.divf %9, %10 : vector<8x1xf32>
    %cst_4 = arith.constant 9.99999974E-6 : f32
    %12 = vector.broadcast %cst_4 : f32 to vector<8x1xf32>
    %13 = arith.addf %11, %12 : vector<8x1xf32>
    %14 = math.rsqrt %13 : vector<8x1xf32>
    %15 = vector.broadcast %14 : vector<8x1xf32> to vector<8x32xf32>
    %16 = arith.mulf %6, %15 : vector<8x32xf32>
    %17 = arith.truncf %16 : vector<8x32xf32> to vector<8x32xbf16>
    %c0_5 = arith.constant 0 : index
    %c0_6 = arith.constant 0 : index
    %18 = vector.load %arg2[%c0_5, %c0_6] : memref<32x128xbf16, #tpu.memory_space<vmem>>, vector<32x128xbf16>
    %cst_7 = arith.constant dense<0.000000e+00> : vector<8x128xf32>
    %19 = tpu.matmul %17, %18, %cst_7 {dimension_numbers = #tpu.dot_dimension_numbers<[1], [0], [0], [1], [0, 0, 1, 1], [], []>} : vector<8x32xbf16>, vector<32x128xbf16>, vector<8x128xf32> -> vector<8x128xf32>
    %c0_8 = arith.constant 0 : index
    %c0_9 = arith.constant 0 : index
    %20 = vector.load %arg3[%c0_8, %c0_9] : memref<1x128xf32, #tpu.memory_space<vmem>>, vector<1x128xf32>
    %21 = vector.broadcast %20 : vector<1x128xf32> to vector<8x128xf32>
    %22 = arith.addf %19, %21 : vector<8x128xf32>
    %cst_10 = arith.constant 0.000000e+00 : f32
    %23 = vector.broadcast %cst_10 : f32 to vector<8x128xf32>
    %24 = arith.maximumf %22, %23 : vector<8x128xf32>
    %25 = arith.truncf %24 : vector<8x128xf32> to vector<8x128xbf16>
    %c0_11 = arith.constant 0 : index
    %c0_12 = arith.constant 0 : index
    %26 = vector.load %arg4[%c0_11, %c0_12] : memref<128x32xbf16, #tpu.memory_space<vmem>>, vector<128x32xbf16>
    %cst_13 = arith.constant dense<0.000000e+00> : vector<8x32xf32>
    %27 = tpu.matmul %25, %26, %cst_13 {dimension_numbers = #tpu.dot_dimension_numbers<[1], [0], [0], [1], [0, 0, 1, 1], [], []>} : vector<8x128xbf16>, vector<128x32xbf16>, vector<8x32xf32> -> vector<8x32xf32>
    %28 = arith.addf %0, %27 : vector<8x32xf32>
    %c0_14 = arith.constant 0 : index
    %c0_15 = arith.constant 0 : index
    %29 = vector.load %arg5[%c0_14, %c0_15] : memref<1x32xf32, #tpu.memory_space<vmem>>, vector<1x32xf32>
    %30 = vector.broadcast %29 : vector<1x32xf32> to vector<8x32xf32>
    %31 = arith.addf %28, %30 : vector<8x32xf32>
    %c0_16 = arith.constant 0 : index
    %c0_17 = arith.constant 0 : index
    %32 = vector.load %arg6[%c0_16, %c0_17] : memref<8x32xf32, #tpu.memory_space<vmem>>, vector<8x32xf32>
    tpu.vector_store %arg6[%c0_16, %c0_17], %31 {strides = array<i32>} : memref<8x32xf32, #tpu.memory_space<vmem>>, vector<8x32xf32>,
    return
  }
  func.func @transform_0(%arg0: i32) -> (i32, i32) {
    %c0_i32 = arith.constant 0 : i32
    %c0_i32_0 = arith.constant 0 : i32
    return %arg0, %c0_i32 : i32, i32
  }
  func.func @transform_1(%arg0: i32) -> (i32, i32) {
    %c0_i32 = arith.constant 0 : i32
    %c0_i32_0 = arith.constant 0 : i32
    %c0_i32_1 = arith.constant 0 : i32
    return %c0_i32, %c0_i32_0 : i32, i32
  }
  func.func @transform_2(%arg0: i32) -> (i32, i32) {
    %c0_i32 = arith.constant 0 : i32
    %c0_i32_0 = arith.constant 0 : i32
    %c0_i32_1 = arith.constant 0 : i32
    return %c0_i32, %c0_i32_0 : i32, i32
  }
  func.func @transform_3(%arg0: i32) -> (i32, i32) {
    %c0_i32 = arith.constant 0 : i32
    %c0_i32_0 = arith.constant 0 : i32
    %c0_i32_1 = arith.constant 0 : i32
    return %c0_i32, %c0_i32_0 : i32, i32
  }
  func.func @transform_4(%arg0: i32) -> (i32, i32) {
    %c0_i32 = arith.constant 0 : i32
    %c0_i32_0 = arith.constant 0 : i32
    %c0_i32_1 = arith.constant 0 : i32
    return %c0_i32, %c0_i32_0 : i32, i32
  }
  func.func @transform_5(%arg0: i32) -> (i32, i32) {
    %c0_i32 = arith.constant 0 : i32
    %c0_i32_0 = arith.constant 0 : i32
    return %arg0, %c0_i32 : i32, i32
  }
}

module attributes {stable_mosaic.version = 11 : i64} {
  func.func @kernel(%arg0: i32, %arg1: memref<8x32xf32, #tpu.memory_space<vmem>>, %arg2: memref<32x128xbf16, #tpu.memory_space<vmem>>, %arg3: memref<1x128xf32, #tpu.memory_space<vmem>>, %arg4: memref<128x32xbf16, #tpu.memory_space<vmem>>, %arg5: memref<1x32xf32, #tpu.memory_space<vmem>>, %arg6: memref<8x32xf32, #tpu.memory_space<vmem>>) attributes {dimension_semantics = [#tpu.dimension_semantics<parallel>], iteration_bounds = array<i64: 2>, scalar_prefetch = 0 : i64, scratch_operands = 0 : i64, tpu.core_type = #tpu.core_type<tc>, window_params = [{transform_indices = @transform_0, window_bounds = array<i64: 8, 32>}, {pipeline_mode = #tpu.pipeline_mode<synchronous>, transform_indices = @transform_1, window_bounds = array<i64: 32, 128>}, {pipeline_mode = #tpu.pipeline_mode<synchronous>, transform_indices = @transform_2, window_bounds = array<i64: 1, 128>}, {pipeline_mode = #tpu.pipeline_mode<synchronous>, transform_indices = @transform_3, window_bounds = array<i64: 128, 32>}, {pipeline_mode = #tpu.pipeline_mode<synchronous>, transform_indices = @transform_4, window_bounds = array<i64: 1, 32>}, {transform_indices = @transform_5, window_bounds = array<i64: 8, 32>}]} {
    %c0 = arith.constant 0 : index
    %c0_0 = arith.constant 0 : index
    %0 = vector.load %arg1[%c0, %c0_0] : memref<8x32xf32, #tpu.memory_space<vmem>>, vector<8x32xf32>
    %cst = arith.constant dense<0.000000e+00> : vector<8xf32>
    %1 = vector.multi_reduction <add>, %0, %cst [1] : vector<8x32xf32> to vector<8xf32>
    %2 = vector.shape_cast %1 : vector<8xf32> to vector<8x1xf32>
    %cst_1 = arith.constant 3.200000e+01 : f32
    %3 = vector.broadcast %cst_1 : f32 to vector<8x1xf32>
    %4 = arith.divf %2, %3 : vector<8x1xf32>
    %5 = vector.broadcast %4 : vector<8x1xf32> to vector<8x32xf32>
    %6 = arith.subf %0, %5 : vector<8x32xf32>
    %7 = arith.mulf %6, %6 : vector<8x32xf32>
    %cst_2 = arith.constant dense<0.000000e+00> : vector<8xf32>
    %8 = vector.multi_reduction <add>, %7, %cst_2 [1] : vector<8x32xf32> to vector<8xf32>
    %9 = vector.shape_cast %8 : vector<8xf32> to vector<8x1xf32>
    %cst_3 = arith.constant 3.200000e+01 : f32
    %10 = vector.broadcast %cst_3 : f32 to vector<8x1xf32>
    %11 = arith.divf %9, %10 : vector<8x1xf32>
    %cst_4 = arith.constant 9.99999974E-6 : f32
    %12 = vector.broadcast %cst_4 : f32 to vector<8x1xf32>
    %13 = arith.addf %11, %12 : vector<8x1xf32>
    %14 = math.rsqrt %13 : vector<8x1xf32>
    %15 = vector.broadcast %14 : vector<8x1xf32> to vector<8x32xf32>
    %16 = arith.mulf %6, %15 : vector<8x32xf32>
    %17 = arith.truncf %16 : vector<8x32xf32> to vector<8x32xbf16>
    %c0_5 = arith.constant 0 : index
    %c0_6 = arith.constant 0 : index
    %18 = vector.load %arg2[%c0_5, %c0_6] : memref<32x128xbf16, #tpu.memory_space<vmem>>, vector<32x128xbf16>
    %cst_7 = arith.constant dense<0.000000e+00> : vector<8x128xf32>
    %19 = tpu.matmul %17, %18, %cst_7 {dimension_numbers = #tpu.dot_dimension_numbers<[1], [0], [0], [1], [0, 0, 1, 1], [], []>} : vector<8x32xbf16>, vector<32x128xbf16>, vector<8x128xf32> -> vector<8x128xf32>
    %c0_8 = arith.constant 0 : index
    %c0_9 = arith.constant 0 : index
    %20 = vector.load %arg3[%c0_8, %c0_9] : memref<1x128xf32, #tpu.memory_space<vmem>>, vector<1x128xf32>
    %21 = vector.broadcast %20 : vector<1x128xf32> to vector<8x128xf32>
    %22 = arith.addf %19, %21 : vector<8x128xf32>
    %cst_10 = arith.constant 0.000000e+00 : f32
    %23 = vector.broadcast %cst_10 : f32 to vector<8x128xf32>
    %24 = arith.maximumf %22, %23 : vector<8x128xf32>
    %25 = arith.truncf %24 : vector<8x128xf32> to vector<8x128xbf16>
    %c0_11 = arith.constant 0 : index
    %c0_12 = arith.constant 0 : index
    %26 = vector.load %arg4[%c0_11, %c0_12] : memref<128x32xbf16, #tpu.memory_space<vmem>>, vector<128x32xbf16>
    %cst_13 = arith.constant dense<0.000000e+00> : vector<8x32xf32>
    %27 = tpu.matmul %25, %26, %cst_13 {dimension_numbers = #tpu.dot_dimension_numbers<[1], [0], [0], [1], [0, 0, 1, 1], [], []>} : vector<8x128xbf16>, vector<128x32xbf16>, vector<8x32xf32> -> vector<8x32xf32>
    %28 = arith.addf %0, %27 : vector<8x32xf32>
    %c0_14 = arith.constant 0 : index
    %c0_15 = arith.constant 0 : index
    %29 = vector.load %arg5[%c0_14, %c0_15] : memref<1x32xf32, #tpu.memory_space<vmem>>, vector<1x32xf32>
    %30 = vector.broadcast %29 : vector<1x32xf32> to vector<8x32xf32>
    %31 = arith.addf %28, %30 : vector<8x32xf32>
    %c0_16 = arith.constant 0 : index
    %c0_17 = arith.constant 0 : index
    %32 = vector.load %arg6[%c0_16, %c0_17] : memref<8x32xf32, #tpu.memory_space<vmem>>, vector<8x32xf32>
    tpu.vector_store %arg6[%c0_16, %c0_17], %31 {strides = array<i32>} : memref<8x32xf32, #tpu.memory_space<vmem>>, vector<8x32xf32>,
    return
  }
  func.func @transform_0(%arg0: i32) -> (i32, i32) {
    %c0_i32 = arith.constant 0 : i32
    %c0_i32_0 = arith.constant 0 : i32
    return %arg0, %c0_i32 : i32, i32
  }
  func.func @transform_1(%arg0: i32) -> (i32, i32) {
    %c0_i32 = arith.constant 0 : i32
    %c0_i32_0 = arith.constant 0 : i32
    %c0_i32_1 = arith.constant 0 : i32
    return %c0_i32, %c0_i32_0 : i32, i32
  }
  func.func @transform_2(%arg0: i32) -> (i32, i32) {
    %c0_i32 = arith.constant 0 : i32
    %c0_i32_0 = arith.constant 0 : i32
    %c0_i32_1 = arith.constant 0 : i32
    return %c0_i32, %c0_i32_0 : i32, i32
  }
  func.func @transform_3(%arg0: i32) -> (i32, i32) {
    %c0_i32 = arith.constant 0 : i32
    %c0_i32_0 = arith.constant 0 : i32
    %c0_i32_1 = arith.constant 0 : i32
    return %c0_i32, %c0_i32_0 : i32, i32
  }
  func.func @transform_4(%arg0: i32) -> (i32, i32) {
    %c0_i32 = arith.constant 0 : i32
    %c0_i32_0 = arith.constant 0 : i32
    %c0_i32_1 = arith.constant 0 : i32
    return %c0_i32, %c0_i32_0 : i32, i32
  }
  func.func @transform_5(%arg0: i32) -> (i32, i32) {
    %c0_i32 = arith.constant 0 : i32
    %c0_i32_0 = arith.constant 0 : i32
    return %arg0, %c0_i32 : i32, i32
  }
}

</mosaic_0001>

<llo_original>
// kernel: tpu_custom_call.1
$region0: #{tpu_custom_call.1}
  #allocation0 [shape = 'u32[]', space=smem, size = 0x4, offset = 0x4, fixed_abs, tag = 'smem constant byte address 0x4 - core index']
  #allocation1 [shape = 'u32[72,128]{1,0:T(1,128)}', space=vmem, size = 0x9000, scoped, tag = 'internal scratch']
  %s0 = inlined_call_operand.vmem [shape: f32[16,32], index: 0, kind: input, shape index: {}]
  %s1 = inlined_call_operand.vmem [shape: bf16[32,128], index: 1, kind: input, shape index: {}]
  %s2 = inlined_call_operand.vmem [shape: f32[1,128], index: 2, kind: input, shape index: {}]
  %s3 = inlined_call_operand.vmem [shape: bf16[128,32], index: 3, kind: input, shape index: {}]
  %s4 = inlined_call_operand.vmem [shape: f32[1,32], index: 4, kind: input, shape index: {}]
  %s5 = inlined_call_operand.hbm [shape: f32[16,32], index: 5, kind: output, shape index: {}]
  %s6 = sld [smem:[#allocation0]]
  $region53: #{tpu_custom_call.1} parent=0
    _
  %s8 = ssub.s32 1, %s6
  %s9 = scalar_select 0, %s8, %s6
  $region1: #{tpu_custom_call.1} parent=0
    #allocation2 [shape = 'u8[8192]{0}', space=vmem, size = 0x2000, scoped, tag = 'output window, operand 0']
    #allocation3 [shape = 's32[2]{0}', space=sflag, size = 0x8, scoped, tag = 'scoped memory for tpu_custom_call.1']
    %10 = vsyncpa [#allocation3], 0
    %s11 = scalar_lea.sflag [#allocation3], 1
    %12 = vsyncpa %s11, 0
    loop: start=0, step=1, limit=4
    $region2: #{tpu_custom_call.1} parent=1 // loop_pre_header
      _
    $region3: #{tpu_custom_call.1} parent=1 // loop_header
      %s14 = sphi 0, %s18
      %p15 = scmp.ge.s32.totalorder %s14, 4
      %s24 = sphi 0, %s26
      %s27 = sphi 0, %s24
      %s28 = sphi 0, %s27
      %s44 = sphi 0, %s28
      %s48 = sphi 0, %s48
      %s50 = sphi 0, %s48
      %s51 = sphi 0, %s50
      %s65 = sphi 0, %s51
      %s69 = sphi 0, %s69
      %s71 = sphi 0, %s69
      %s72 = sphi 0, %s71
      %s86 = sphi 0, %s72
      %s90 = sphi 0, %s90
      %s92 = sphi 0, %s90
      %s93 = sphi 0, %s92
      %s107 = sphi 0, %s93
      %s111 = sphi 0, %s111
      %s113 = sphi 0, %s111
      %s114 = sphi 0, %s113
      %s128 = sphi 0, %s114
      %s134 = sphi 0, %s136
      %s137 = sphi 0, %s134
      %s138 = sphi 0, %s137
      %s154 = sphi 0, %s138
    $region4: #{tpu_custom_call.1} parent=1 // loop_header_branch
      %17 = sbr.rel (%p15) target = $region8
    $region5: #{tpu_custom_call.1} parent=1 // loop_body
      %s19 = ssub.s32 %s14, 1
      %s20 = ssub.s32 %s14, 2
      %s21 = sadd.s32 %s14, 1
      %s22 = ssub.s32 %s14, %s21
      %p23 = scmp.eq.s32.totalorder %s22, 0
      %s25 = sadd.s32 %s24, 1
      %s26 = scalar_select %p23, %s24, %s25
      %p29 = pneg %p23
      %p30 = scmp.eq.s32.totalorder %s14, 1
      %p31 = por %p29, %p30
      %p32 = scmp.ne.s32.totalorder %s24, %s27
      %p33 = scmp.eq.s32.totalorder %s14, 0
      %p34 = por %p32, %p33
      %p35 = scmp.ne.s32.totalorder %s24, %s27
      %p36 = scmp.eq.s32.totalorder %s19, 1
      %p37 = por %p35, %p36
      %p38 = scmp.ne.s32.totalorder %s27, %s28
      %p39 = scmp.eq.s32.totalorder %s19, 0
      %p40 = por %p38, %p39
      %p41 = scmp.ne.s32.totalorder %s27, %s28
      %p42 = scmp.eq.s32.totalorder %s20, 1
      %p43 = por %p41, %p42
      %p45 = scmp.ne.s32.totalorder %s28, %s44
      %p46 = scmp.eq.s32.totalorder %s20, 0
      %p47 = por %p45, %p46
      %s49 = sadd.s32 %s48, 1
      %p52 = scmp.eq.s32.totalorder %s14, 1
      %p53 = scmp.ne.s32.totalorder %s48, %s50
      %p54 = scmp.eq.s32.totalorder %s14, 0
      %p55 = por %p53, %p54
      %p56 = scmp.ne.s32.totalorder %s48, %s50
      %p57 = scmp.eq.s32.totalorder %s19, 1
      %p58 = por %p56, %p57
      %p59 = scmp.ne.s32.totalorder %s50, %s51
      %p60 = scmp.eq.s32.totalorder %s19, 0
      %p61 = por %p59, %p60
      %p62 = scmp.ne.s32.totalorder %s50, %s51
      %p63 = scmp.eq.s32.totalorder %s20, 1
      %p64 = por %p62, %p63
      %p66 = scmp.ne.s32.totalorder %s51, %s65
      %p67 = scmp.eq.s32.totalorder %s20, 0
      %p68 = por %p66, %p67
      %s70 = sadd.s32 %s69, 1
      %p73 = scmp.eq.s32.totalorder %s14, 1
      %p74 = scmp.ne.s32.totalorder %s69, %s71
      %p75 = scmp.eq.s32.totalorder %s14, 0
      %p76 = por %p74, %p75
      %p77 = scmp.ne.s32.totalorder %s69, %s71
      %p78 = scmp.eq.s32.totalorder %s19, 1
      %p79 = por %p77, %p78
      %p80 = scmp.ne.s32.totalorder %s71, %s72
      %p81 = scmp.eq.s32.totalorder %s19, 0
      %p82 = por %p80, %p81
      %p83 = scmp.ne.s32.totalorder %s71, %s72
      %p84 = scmp.eq.s32.totalorder %s20, 1
      %p85 = por %p83, %p84
      %p87 = scmp.ne.s32.totalorder %s72, %s86
      %p88 = scmp.eq.s32.totalorder %s20, 0
      %p89 = por %p87, %p88
      %s91 = sadd.s32 %s90, 1
      %p94 = scmp.eq.s32.totalorder %s14, 1
      %p95 = scmp.ne.s32.totalorder %s90, %s92
      %p96 = scmp.eq.s32.totalorder %s14, 0
      %p97 = por %p95, %p96
      %p98 = scmp.ne.s32.totalorder %s90, %s92
      %p99 = scmp.eq.s32.totalorder %s19, 1
      %p100 = por %p98, %p99
      %p101 = scmp.ne.s32.totalorder %s92, %s93
      %p102 = scmp.eq.s32.totalorder %s19, 0
      %p103 = por %p101, %p102
      %p104 = scmp.ne.s32.totalorder %s92, %s93
      %p105 = scmp.eq.s32.totalorder %s20, 1
      %p106 = por %p104, %p105
      %p108 = scmp.ne.s32.totalorder %s93, %s107
      %p109 = scmp.eq.s32.totalorder %s20, 0
      %p110 = por %p108, %p109
      %s112 = sadd.s32 %s111, 1
      %p115 = scmp.eq.s32.totalorder %s14, 1
      %p116 = scmp.ne.s32.totalorder %s111, %s113
      %p117 = scmp.eq.s32.totalorder %s14, 0
      %p118 = por %p116, %p117
      %p119 = scmp.ne.s32.totalorder %s111, %s113
      %p120 = scmp.eq.s32.totalorder %s19, 1
      %p121 = por %p119, %p120
      %p122 = scmp.ne.s32.totalorder %s113, %s114
      %p123 = scmp.eq.s32.totalorder %s19, 0
      %p124 = por %p122, %p123
      %p125 = scmp.ne.s32.totalorder %s113, %s114
      %p126 = scmp.eq.s32.totalorder %s20, 1
      %p127 = por %p125, %p126
      %p129 = scmp.ne.s32.totalorder %s114, %s128
      %p130 = scmp.eq.s32.totalorder %s20, 0
      %p131 = por %p129, %p130
      %s132 = ssub.s32 %s14, %s21
      %p133 = scmp.eq.s32.totalorder %s132, 0
      %s135 = sadd.s32 %s134, 1
      %s136 = scalar_select %p133, %s134, %s135
      %p139 = pneg %p133
      %p140 = scmp.eq.s32.totalorder %s14, 1
      %p141 = por %p139, %p140
      %p142 = scmp.ne.s32.totalorder %s134, %s137
      %p143 = scmp.eq.s32.totalorder %s14, 0
      %p144 = por %p142, %p143
      %p145 = scmp.ne.s32.totalorder %s134, %s137
      %p146 = scmp.eq.s32.totalorder %s19, 1
      %p147 = por %p145, %p146
      %p148 = scmp.ne.s32.totalorder %s137, %s138
      %p149 = scmp.eq.s32.totalorder %s19, 0
      %p150 = por %p148, %p149
      %p151 = scmp.ne.s32.totalorder %s137, %s138
      %p152 = scmp.eq.s32.totalorder %s20, 1
      %p153 = por %p151, %p152
      %p155 = scmp.ne.s32.totalorder %s138, %s154
      %p156 = scmp.eq.s32.totalorder %s20, 0
      %p157 = por %p155, %p156
      %p158 = scmp.le.s32.totalorder 1, %s14
      %p159 = scmp.lt.s32.totalorder %s14, 3
      %p160 = pnand %p158, %p159
      %p161 = pneg %p160
      // Predicated region
      $region9: #{tpu_custom_call.1} parent=5 // pred_check
        _
      $region10: #{tpu_custom_call.1} parent=5 // pred_check_branch
        %163 = sbr.rel (%p160) target = $region12
      $region11: #{tpu_custom_call.1} parent=5 // pred_region
        %s164 = ssub.s32 %s14, 1
        // Predicated region
        $region13: #{tpu_custom_call.1} parent=11 // pred_check
          %p165 = pneg %p61
        $region14: #{tpu_custom_call.1} parent=11 // pred_check_branch
          %167 = sbr.rel (%p165) target = $region16
        $region15: #{tpu_custom_call.1} parent=11 // pred_region
          _
        $region16: #{tpu_custom_call.1} parent=11 // pred_fallthru
          _
        // Predicated region
        $region17: #{tpu_custom_call.1} parent=11 // pred_check
          %p168 = pneg %p82
        $region18: #{tpu_custom_call.1} parent=11 // pred_check_branch
          %170 = sbr.rel (%p168) target = $region20
        $region19: #{tpu_custom_call.1} parent=11 // pred_region
          _
        $region20: #{tpu_custom_call.1} parent=11 // pred_fallthru
          _
        // Predicated region
        $region21: #{tpu_custom_call.1} parent=11 // pred_check
          %p171 = pneg %p103
        $region22: #{tpu_custom_call.1} parent=11 // pred_check_branch
          %173 = sbr.rel (%p171) target = $region24
        $region23: #{tpu_custom_call.1} parent=11 // pred_region
          _
        $region24: #{tpu_custom_call.1} parent=11 // pred_fallthru
          _
        // Predicated region
        $region25: #{tpu_custom_call.1} parent=11 // pred_check
          %p174 = pneg %p124
        $region26: #{tpu_custom_call.1} parent=11 // pred_check_branch
          %176 = sbr.rel (%p174) target = $region28
        $region27: #{tpu_custom_call.1} parent=11 // pred_region
          _
        $region28: #{tpu_custom_call.1} parent=11 // pred_fallthru
          _
      $region12: #{tpu_custom_call.1} parent=5 // pred_fallthru
        _
      %p177 = scmp.lt.s32.totalorder %s14, 2
      // Predicated region
      $region29: #{tpu_custom_call.1} parent=5 // pred_check
        %p178 = pneg %p177
      $region30: #{tpu_custom_call.1} parent=5 // pred_check_branch
        %180 = sbr.rel (%p178) target = $region32
      $region31: #{tpu_custom_call.1} parent=5 // pred_region
        // Predicated region
        $region33: #{tpu_custom_call.1} parent=31 // pred_check
          %p181 = pneg %p34
        $region34: #{tpu_custom_call.1} parent=31 // pred_check_branch
          %183 = sbr.rel (%p181) target = $region36
        $region35: #{tpu_custom_call.1} parent=31 // pred_region
          %p184 = scmp.lt.s32.totalorder %s14, 1
          %s185 = scalar_select %p184, %s14, 1
          %s186 = smul.addr %s185, 8
          %s187 = scalar_lea.vmem %s0, %s186
        $region36: #{tpu_custom_call.1} parent=31 // pred_fallthru
          _
      $region32: #{tpu_custom_call.1} parent=5 // pred_fallthru
        _
      %p188 = scmp.le.s32.totalorder 1, %s14
      %p189 = scmp.lt.s32.totalorder %s14, 3
      %p190 = pnand %p188, %p189
      %p191 = pneg %p190
      // Predicated region
      $region37: #{tpu_custom_call.1} parent=5 // pred_check
        _
      $region38: #{tpu_custom_call.1} parent=5 // pred_check_branch
        %193 = sbr.rel (%p190) target = $region40
      $region39: #{tpu_custom_call.1} parent=5 // pred_region
        %s194 = ssub.s32 %s14, 1
        %p195 = scmp.lt.s32.totalorder %s19, 1
        %s196 = scalar_select %p195, %s19, 1
        %s197 = smul.addr %s196, 8
        %s198 = scalar_lea.vmem %s0, %s197
        %p199 = pneg %p40
        %p200 = pneg %p37
        %p201 = pneg %p61
        %p202 = pneg %p58
        %p203 = pneg %p82
        %p204 = pneg %p79
        %p205 = pneg %p103
        %p206 = pneg %p100
        %p207 = pneg %p124
        %p208 = pneg %p121
        %p209 = pneg %p150
        %p210 = pneg %p147
        %s211 = sand.u32 %s137, 1
        %s212 = scalar_lea.sflag [#allocation3], %s211
        %s213 = sand.u32 %s137, 1
        %s214 = smul.addr %s213, 8
        %s215 = scalar_lea.vmem [#allocation2], %s214
        %p216 = scmp.lt.s32.totalorder %s19, 1
        %s217 = scalar_select %p216, %s19, 1
        %s218 = smul.addr %s217, 8
        %s219 = scalar_lea.vmem %s0, %s218
        %v221 = vld [vmem:[%s219] sm:$0xff]
        %vm222 = vcmask 261120
        %v223 = vsel %vm222, %v221, 0.0
        %224 = vadd.xlane.f32.xlu0 %v223
        %v225 = vpop.xlane.xlu0 %224
        %v226 = vrcp.pop 32.0
        %v227 = vmul.f32 32.0, %v226
        %v228 = vsub.f32 1.0, %v227
        %v229 = vmul.f32 %v226, %v228
        %v230 = vadd.f32 %v226, %v229
        %vm231 = vweird.f32 %v226
        %v232 = vsel %vm231, %v226, %v230
        %v233 = vmul.f32 %v225, %v232
        %v234 = vsub.f32 %v221, %v233
        %v235 = vmul.f32 %v234, %v234
        %v236 = vsel %vm222, %v235, 0.0
        %237 = vadd.xlane.f32.xlu0 %v236
        %v238 = vpop.xlane.xlu0 %237
        %v239 = vmul.f32 %v238, %v232
        %v240 = vadd.f32 %v239, 1e-05
        %v241 = vrsqrt.pop %v240
        %v242 = vmul.f32 %v241, %v240
        %v243 = vmul.f32 %v242, %v241
        %v244 = vmul.f32 0.5, %v243
        %v245 = vsub.f32 1.5, %v244
        %v246 = vmul.f32 %v241, %v245
        %vm247 = vweird.f32 %v240
        %vm248 = vweird.f32 %v241
        %vm249 = vmor %vm247, %vm248
        %v250 = vsel %vm249, %v241, %v246
        %v251 = vmul.f32 %v234, %v250
        %v252 = vpack.c.bf16 %v251, %v251
        %v253 = vld [vmem:[%s1] sm:$0xf]
        %v254 = vld [vmem:[%s1 + $0x4] sm:$0xf]
        %v255 = vld [vmem:[%s1 + $0x8] sm:$0xf]
        %v256 = vld [vmem:[%s1 + $0xc] sm:$0xf]
        %v257 = vld [vmem:[%s2] sm:$0x1]
        %v259 = vperm.slane %v257, 0
        %v265 = vunpack.c.l.b16 %v253
        %v266 = vunpack.c.l.b16 %v254
        %v267 = vunpack.c.l.b16 %v255
        %v268 = vunpack.c.l.b16 %v256
        %v269 = vpack.c.b16 %v266, %v265
        %v270 = vpack.c.b16 %v268, %v267
        %v274 = vsel %vm222, %v252, 0
        %276 = vmatpush.bf16.msra.mxu0 0
        %277 = vmatpush.bf16.msra.mxu0 0
        %278 = vmatpush.bf16.msra.mxu0 0
        %279 = vmatpush.bf16.msra.mxu0 0
        %280 = vmatpush.bf16.msra.mxu0 0
        %281 = vmatpush.bf16.msra.mxu0 0
        %282 = vmatpush.bf16.msra.mxu0 %v270
        %283 = vmatpush.bf16.msra.mxu0 %v269
        %284 = vmatmul.bf16.gmra.mxu0 %v274
        %v285 = vpop.f32.mrf.mxu0
        %v286 = vadd.f32 %v259, %v285
        %v287 = vpop.f32.mrf.mxu0
        %288 = vdwg.mxu0
        %v289 = vmax.f32 %v286, 0.0
        %v290 = vpack.c.bf16 %v289, %v289
        %v291 = vld [vmem:[%s3] sm:$0xf]
        %v292 = vld [vmem:[%s3 + $0x4] sm:$0xf]
        %v293 = vld [vmem:[%s3 + $0x8] sm:$0xf]
        %v294 = vld [vmem:[%s3 + $0xc] sm:$0xf]
        %v295 = vld [vmem:[%s3 + $0x10] sm:$0xf]
        %v296 = vld [vmem:[%s3 + $0x14] sm:$0xf]
        %v297 = vld [vmem:[%s3 + $0x18] sm:$0xf]
        %v298 = vld [vmem:[%s3 + $0x1c] sm:$0xf]
        %v299 = vld [vmem:[%s3 + $0x20] sm:$0xf]
        %v300 = vld [vmem:[%s3 + $0x24] sm:$0xf]
        %v301 = vld [vmem:[%s3 + $0x28] sm:$0xf]
        %v302 = vld [vmem:[%s3 + $0x2c] sm:$0xf]
        %v303 = vld [vmem:[%s3 + $0x30] sm:$0xf]
        %v304 = vld [vmem:[%s3 + $0x34] sm:$0xf]
        %v305 = vld [vmem:[%s3 + $0x38] sm:$0xf]
        %v306 = vld [vmem:[%s3 + $0x3c] sm:$0xf]
        %v323 = vunpack.c.l.b16 %v291
        %v324 = vunpack.c.l.b16 %v292
        %v325 = vunpack.c.l.b16 %v293
        %v326 = vunpack.c.l.b16 %v294
        %v327 = vunpack.c.l.b16 %v295
        %v328 = vunpack.c.l.b16 %v296
        %v329 = vunpack.c.l.b16 %v297
        %v330 = vunpack.c.l.b16 %v298
        %v331 = vunpack.c.l.b16 %v299
        %v332 = vunpack.c.l.b16 %v300
        %v333 = vunpack.c.l.b16 %v301
        %v334 = vunpack.c.l.b16 %v302
        %v335 = vunpack.c.l.b16 %v303
        %v336 = vunpack.c.l.b16 %v304
        %v337 = vunpack.c.l.b16 %v305
        %v338 = vunpack.c.l.b16 %v306
        %v339 = vpack.c.b16 %v324, %v323
        %v340 = vpack.c.b16 %v326, %v325
        %v341 = vpack.c.b16 %v328, %v327
        %v342 = vpack.c.b16 %v330, %v329
        %v343 = vpack.c.b16 %v332, %v331
        %v344 = vpack.c.b16 %v334, %v333
        %v345 = vpack.c.b16 %v336, %v335
        %v346 = vpack.c.b16 %v338, %v337
        %355 = vmatpush.bf16.msra.mxu0 %v346
        %356 = vmatpush.bf16.msra.mxu0 %v345
        %357 = vmatpush.bf16.msra.mxu0 %v344
        %358 = vmatpush.bf16.msra.mxu0 %v343
        %359 = vmatpush.bf16.msra.mxu0 %v342
        %360 = vmatpush.bf16.msra.mxu0 %v341
        %361 = vmatpush.bf16.msra.mxu0 %v340
        %362 = vmatpush.bf16.msra.mxu0 %v339
        %363 = vmatmul.bf16.gmra.mxu0 %v290
        %v364 = vpop.f32.mrf.mxu0
        %v365 = vadd.f32 0.0, %v364
        %v366 = vpop.f32.mrf.mxu0
        %367 = vdwg.mxu0
        %v368 = vadd.f32 %v221, %v365
        %v369 = vld [vmem:[%s4] sm:$0x1]
        %v371 = vperm.slane %v369, 0
        %v373 = vadd.f32 %v368, %v371
        %374 = vst.msk [vmem:[%s215] sm:$0xff] %vm222, %v373
        %s375 = sand.u32 %s137, 1
        %s376 = scalar_lea.sflag [#allocation3], %s375
        %s377 = sand.u32 %s137, 1
        %s378 = smul.addr %s377, 8
        %s379 = scalar_lea.vmem [#allocation2], %s378
        // Predicated region
        $region41: #{tpu_custom_call.1} parent=39 // pred_check
          %p380 = pneg %p147
        $region42: #{tpu_custom_call.1} parent=39 // pred_check_branch
          %382 = sbr.rel (%p380) target = $region44
        $region43: #{tpu_custom_call.1} parent=39 // pred_region
          %384 = vsyncadd %s376, 0
          %s385 = smul.addr %s19, 8
          %s386 = scalar_lea.hbm %s5, %s385
          %s388 = sshll.u32 %s379, 4
          %s389 = int_to_ptr.vmem [resolvable:$true] %s388
          %s390 = sshll.u32 %s386, 4
          %s391 = int_to_ptr.hbm [resolvable:$true] %s390
          %393 = dma.vmem_to_hbm [thread:$0]  %s389, 128, %s391, %s376
        $region44: #{tpu_custom_call.1} parent=39 // pred_fallthru
          _
      $region40: #{tpu_custom_call.1} parent=5 // pred_fallthru
        _
      %p394 = scmp.le.s32.totalorder 2, %s14
      // Predicated region
      $region45: #{tpu_custom_call.1} parent=5 // pred_check
        %p395 = pneg %p394
      $region46: #{tpu_custom_call.1} parent=5 // pred_check_branch
        %397 = sbr.rel (%p395) target = $region48
      $region47: #{tpu_custom_call.1} parent=5 // pred_region
        %s398 = ssub.s32 %s14, 2
        // Predicated region
        $region49: #{tpu_custom_call.1} parent=47 // pred_check
          %p399 = pneg %p153
        $region50: #{tpu_custom_call.1} parent=47 // pred_check_branch
          %401 = sbr.rel (%p399) target = $region52
        $region51: #{tpu_custom_call.1} parent=47 // pred_region
          %s402 = sand.u32 %s138, 1
          %s403 = scalar_lea.sflag [#allocation3], %s402
          %s404 = sand.u32 %s138, 1
          %s405 = smul.addr %s404, 8
          %s406 = scalar_lea.vmem [#allocation2], %s405
          %408 = dma.done %s403, 128
        $region52: #{tpu_custom_call.1} parent=47 // pred_fallthru
          _
      $region48: #{tpu_custom_call.1} parent=5 // pred_fallthru
        _
    $region6: #{tpu_custom_call.1} parent=1 // loop_footer
      %s18 = sadd.s32 1, %s14
    $region7: #{tpu_custom_call.1} parent=1 // loop_footer_branch
      %13 = sbr.rel target = $region3
    $region8: #{tpu_custom_call.1} parent=1 // loop_exit
      _
    %409 = vsyncpa [#allocation3], 1
    %s410 = scalar_lea.sflag [#allocation3], 1
    %411 = vsyncpa %s410, 1

// kernel: tpu_custom_call.1
$region0: #{tpu_custom_call.1}
  #allocation0 [shape = 'u32[]', space=smem, size = 0x4, offset = 0x4, fixed_abs, tag = 'smem constant byte address 0x4 - core index']
  #allocation1 [shape = 'u32[72,128]{1,0:T(1,128)}', space=vmem, size = 0x9000, scoped, tag = 'internal scratch']
  %s0 = inlined_call_operand.vmem [shape: f32[16,32], index: 0, kind: input, shape index: {}]
  %s1 = inlined_call_operand.vmem [shape: bf16[32,128], index: 1, kind: input, shape index: {}]
  %s2 = inlined_call_operand.vmem [shape: f32[1,128], index: 2, kind: input, shape index: {}]
  %s3 = inlined_call_operand.vmem [shape: bf16[128,32], index: 3, kind: input, shape index: {}]
  %s4 = inlined_call_operand.vmem [shape: f32[1,32], index: 4, kind: input, shape index: {}]
  %s5 = inlined_call_operand.hbm [shape: f32[16,32], index: 5, kind: output, shape index: {}]
  %s6 = sld [smem:[#allocation0]]
  $region53: #{tpu_custom_call.1} parent=0
    _
  %s8 = ssub.s32 1, %s6
  %s9 = scalar_select 0, %s8, %s6
  $region1: #{tpu_custom_call.1} parent=0
    #allocation2 [shape = 'u8[8192]{0}', space=vmem, size = 0x2000, scoped, tag = 'output window, operand 0']
    #allocation3 [shape = 's32[2]{0}', space=sflag, size = 0x8, scoped, tag = 'scoped memory for tpu_custom_call.1']
    %10 = vsyncpa [#allocation3], 0
    %s11 = scalar_lea.sflag [#allocation3], 1
    %12 = vsyncpa %s11, 0
    loop: start=0, step=1, limit=4
    $region2: #{tpu_custom_call.1} parent=1 // loop_pre_header
      _
    $region3: #{tpu_custom_call.1} parent=1 // loop_header
      %s14 = sphi 0, %s18
      %p15 = scmp.ge.s32.totalorder %s14, 4
      %s24 = sphi 0, %s26
      %s27 = sphi 0, %s24
      %s28 = sphi 0, %s27
      %s44 = sphi 0, %s28
      %s48 = sphi 0, %s48
      %s50 = sphi 0, %s48
      %s51 = sphi 0, %s50
      %s65 = sphi 0, %s51
      %s69 = sphi 0, %s69
      %s71 = sphi 0, %s69
      %s72 = sphi 0, %s71
      %s86 = sphi 0, %s72
      %s90 = sphi 0, %s90
      %s92 = sphi 0, %s90
      %s93 = sphi 0, %s92
      %s107 = sphi 0, %s93
      %s111 = sphi 0, %s111
      %s113 = sphi 0, %s111
      %s114 = sphi 0, %s113
      %s128 = sphi 0, %s114
      %s134 = sphi 0, %s136
      %s137 = sphi 0, %s134
      %s138 = sphi 0, %s137
      %s154 = sphi 0, %s138
    $region4: #{tpu_custom_call.1} parent=1 // loop_header_branch
      %17 = sbr.rel (%p15) target = $region8
    $region5: #{tpu_custom_call.1} parent=1 // loop_body
      %s19 = ssub.s32 %s14, 1
      %s20 = ssub.s32 %s14, 2
      %s21 = sadd.s32 %s14, 1
      %s22 = ssub.s32 %s14, %s21
      %p23 = scmp.eq.s32.totalorder %s22, 0
      %s25 = sadd.s32 %s24, 1
      %s26 = scalar_select %p23, %s24, %s25
      %p29 = pneg %p23
      %p30 = scmp.eq.s32.totalorder %s14, 1
      %p31 = por %p29, %p30
      %p32 = scmp.ne.s32.totalorder %s24, %s27
      %p33 = scmp.eq.s32.totalorder %s14, 0
      %p34 = por %p32, %p33
      %p35 = scmp.ne.s32.totalorder %s24, %s27
      %p36 = scmp.eq.s32.totalorder %s19, 1
      %p37 = por %p35, %p36
      %p38 = scmp.ne.s32.totalorder %s27, %s28
      %p39 = scmp.eq.s32.totalorder %s19, 0
      %p40 = por %p38, %p39
      %p41 = scmp.ne.s32.totalorder %s27, %s28
      %p42 = scmp.eq.s32.totalorder %s20, 1
      %p43 = por %p41, %p42
      %p45 = scmp.ne.s32.totalorder %s28, %s44
      %p46 = scmp.eq.s32.totalorder %s20, 0
      %p47 = por %p45, %p46
      %s49 = sadd.s32 %s48, 1
      %p52 = scmp.eq.s32.totalorder %s14, 1
      %p53 = scmp.ne.s32.totalorder %s48, %s50
      %p54 = scmp.eq.s32.totalorder %s14, 0
      %p55 = por %p53, %p54
      %p56 = scmp.ne.s32.totalorder %s48, %s50
      %p57 = scmp.eq.s32.totalorder %s19, 1
      %p58 = por %p56, %p57
      %p59 = scmp.ne.s32.totalorder %s50, %s51
      %p60 = scmp.eq.s32.totalorder %s19, 0
      %p61 = por %p59, %p60
      %p62 = scmp.ne.s32.totalorder %s50, %s51
      %p63 = scmp.eq.s32.totalorder %s20, 1
      %p64 = por %p62, %p63
      %p66 = scmp.ne.s32.totalorder %s51, %s65
      %p67 = scmp.eq.s32.totalorder %s20, 0
      %p68 = por %p66, %p67
      %s70 = sadd.s32 %s69, 1
      %p73 = scmp.eq.s32.totalorder %s14, 1
      %p74 = scmp.ne.s32.totalorder %s69, %s71
      %p75 = scmp.eq.s32.totalorder %s14, 0
      %p76 = por %p74, %p75
      %p77 = scmp.ne.s32.totalorder %s69, %s71
      %p78 = scmp.eq.s32.totalorder %s19, 1
      %p79 = por %p77, %p78
      %p80 = scmp.ne.s32.totalorder %s71, %s72
      %p81 = scmp.eq.s32.totalorder %s19, 0
      %p82 = por %p80, %p81
      %p83 = scmp.ne.s32.totalorder %s71, %s72
      %p84 = scmp.eq.s32.totalorder %s20, 1
      %p85 = por %p83, %p84
      %p87 = scmp.ne.s32.totalorder %s72, %s86
      %p88 = scmp.eq.s32.totalorder %s20, 0
      %p89 = por %p87, %p88
      %s91 = sadd.s32 %s90, 1
      %p94 = scmp.eq.s32.totalorder %s14, 1
      %p95 = scmp.ne.s32.totalorder %s90, %s92
      %p96 = scmp.eq.s32.totalorder %s14, 0
      %p97 = por %p95, %p96
      %p98 = scmp.ne.s32.totalorder %s90, %s92
      %p99 = scmp.eq.s32.totalorder %s19, 1
      %p100 = por %p98, %p99
      %p101 = scmp.ne.s32.totalorder %s92, %s93
      %p102 = scmp.eq.s32.totalorder %s19, 0
      %p103 = por %p101, %p102
      %p104 = scmp.ne.s32.totalorder %s92, %s93
      %p105 = scmp.eq.s32.totalorder %s20, 1
      %p106 = por %p104, %p105
      %p108 = scmp.ne.s32.totalorder %s93, %s107
      %p109 = scmp.eq.s32.totalorder %s20, 0
      %p110 = por %p108, %p109
      %s112 = sadd.s32 %s111, 1
      %p115 = scmp.eq.s32.totalorder %s14, 1
      %p116 = scmp.ne.s32.totalorder %s111, %s113
      %p117 = scmp.eq.s32.totalorder %s14, 0
      %p118 = por %p116, %p117
      %p119 = scmp.ne.s32.totalorder %s111, %s113
      %p120 = scmp.eq.s32.totalorder %s19, 1
      %p121 = por %p119, %p120
      %p122 = scmp.ne.s32.totalorder %s113, %s114
      %p123 = scmp.eq.s32.totalorder %s19, 0
      %p124 = por %p122, %p123
      %p125 = scmp.ne.s32.totalorder %s113, %s114
      %p126 = scmp.eq.s32.totalorder %s20, 1
      %p127 = por %p125, %p126
      %p129 = scmp.ne.s32.totalorder %s114, %s128
      %p130 = scmp.eq.s32.totalorder %s20, 0
      %p131 = por %p129, %p130
      %s132 = ssub.s32 %s14, %s21
      %p133 = scmp.eq.s32.totalorder %s132, 0
      %s135 = sadd.s32 %s134, 1
      %s136 = scalar_select %p133, %s134, %s135
      %p139 = pneg %p133
      %p140 = scmp.eq.s32.totalorder %s14, 1
      %p141 = por %p139, %p140
      %p142 = scmp.ne.s32.totalorder %s134, %s137
      %p143 = scmp.eq.s32.totalorder %s14, 0
      %p144 = por %p142, %p143
      %p145 = scmp.ne.s32.totalorder %s134, %s137
      %p146 = scmp.eq.s32.totalorder %s19, 1
      %p147 = por %p145, %p146
      %p148 = scmp.ne.s32.totalorder %s137, %s138
      %p149 = scmp.eq.s32.totalorder %s19, 0
      %p150 = por %p148, %p149
      %p151 = scmp.ne.s32.totalorder %s137, %s138
      %p152 = scmp.eq.s32.totalorder %s20, 1
      %p153 = por %p151, %p152
      %p155 = scmp.ne.s32.totalorder %s138, %s154
      %p156 = scmp.eq.s32.totalorder %s20, 0
      %p157 = por %p155, %p156
      %p158 = scmp.le.s32.totalorder 1, %s14
      %p159 = scmp.lt.s32.totalorder %s14, 3
      %p160 = pnand %p158, %p159
      %p161 = pneg %p160
      // Predicated region
      $region9: #{tpu_custom_call.1} parent=5 // pred_check
        _
      $region10: #{tpu_custom_call.1} parent=5 // pred_check_branch
        %163 = sbr.rel (%p160) target = $region12
      $region11: #{tpu_custom_call.1} parent=5 // pred_region
        %s164 = ssub.s32 %s14, 1
        // Predicated region
        $region13: #{tpu_custom_call.1} parent=11 // pred_check
          %p165 = pneg %p61
        $region14: #{tpu_custom_call.1} parent=11 // pred_check_branch
          %167 = sbr.rel (%p165) target = $region16
        $region15: #{tpu_custom_call.1} parent=11 // pred_region
          _
        $region16: #{tpu_custom_call.1} parent=11 // pred_fallthru
          _
        // Predicated region
        $region17: #{tpu_custom_call.1} parent=11 // pred_check
          %p168 = pneg %p82
        $region18: #{tpu_custom_call.1} parent=11 // pred_check_branch
          %170 = sbr.rel (%p168) target = $region20
        $region19: #{tpu_custom_call.1} parent=11 // pred_region
          _
        $region20: #{tpu_custom_call.1} parent=11 // pred_fallthru
          _
        // Predicated region
        $region21: #{tpu_custom_call.1} parent=11 // pred_check
          %p171 = pneg %p103
        $region22: #{tpu_custom_call.1} parent=11 // pred_check_branch
          %173 = sbr.rel (%p171) target = $region24
        $region23: #{tpu_custom_call.1} parent=11 // pred_region
          _
        $region24: #{tpu_custom_call.1} parent=11 // pred_fallthru
          _
        // Predicated region
        $region25: #{tpu_custom_call.1} parent=11 // pred_check
          %p174 = pneg %p124
        $region26: #{tpu_custom_call.1} parent=11 // pred_check_branch
          %176 = sbr.rel (%p174) target = $region28
        $region27: #{tpu_custom_call.1} parent=11 // pred_region
          _
        $region28: #{tpu_custom_call.1} parent=11 // pred_fallthru
          _
      $region12: #{tpu_custom_call.1} parent=5 // pred_fallthru
        _
      %p177 = scmp.lt.s32.totalorder %s14, 2
      // Predicated region
      $region29: #{tpu_custom_call.1} parent=5 // pred_check
        %p178 = pneg %p177
      $region30: #{tpu_custom_call.1} parent=5 // pred_check_branch
        %180 = sbr.rel (%p178) target = $region32
      $region31: #{tpu_custom_call.1} parent=5 // pred_region
        // Predicated region
        $region33: #{tpu_custom_call.1} parent=31 // pred_check
          %p181 = pneg %p34
        $region34: #{tpu_custom_call.1} parent=31 // pred_check_branch
          %183 = sbr.rel (%p181) target = $region36
        $region35: #{tpu_custom_call.1} parent=31 // pred_region
          %p184 = scmp.lt.s32.totalorder %s14, 1
          %s185 = scalar_select %p184, %s14, 1
          %s186 = smul.addr %s185, 8
          %s187 = scalar_lea.vmem %s0, %s186
        $region36: #{tpu_custom_call.1} parent=31 // pred_fallthru
          _
      $region32: #{tpu_custom_call.1} parent=5 // pred_fallthru
        _
      %p188 = scmp.le.s32.totalorder 1, %s14
      %p189 = scmp.lt.s32.totalorder %s14, 3
      %p190 = pnand %p188, %p189
      %p191 = pneg %p190
      // Predicated region
      $region37: #{tpu_custom_call.1} parent=5 // pred_check
        _
      $region38: #{tpu_custom_call.1} parent=5 // pred_check_branch
        %193 = sbr.rel (%p190) target = $region40
      $region39: #{tpu_custom_call.1} parent=5 // pred_region
        %s194 = ssub.s32 %s14, 1
        %p195 = scmp.lt.s32.totalorder %s19, 1
        %s196 = scalar_select %p195, %s19, 1
        %s197 = smul.addr %s196, 8
        %s198 = scalar_lea.vmem %s0, %s197
        %p199 = pneg %p40
        %p200 = pneg %p37
        %p201 = pneg %p61
        %p202 = pneg %p58
        %p203 = pneg %p82
        %p204 = pneg %p79
        %p205 = pneg %p103
        %p206 = pneg %p100
        %p207 = pneg %p124
        %p208 = pneg %p121
        %p209 = pneg %p150
        %p210 = pneg %p147
        %s211 = sand.u32 %s137, 1
        %s212 = scalar_lea.sflag [#allocation3], %s211
        %s213 = sand.u32 %s137, 1
        %s214 = smul.addr %s213, 8
        %s215 = scalar_lea.vmem [#allocation2], %s214
        %p216 = scmp.lt.s32.totalorder %s19, 1
        %s217 = scalar_select %p216, %s19, 1
        %s218 = smul.addr %s217, 8
        %s219 = scalar_lea.vmem %s0, %s218
        %v221 = vld [vmem:[%s219] sm:$0xff]
        %vm222 = vcmask 261120
        %v223 = vsel %vm222, %v221, 0.0
        %224 = vadd.xlane.f32.xlu0 %v223
        %v225 = vpop.xlane.xlu0 %224
        %v226 = vrcp.pop 32.0
        %v227 = vmul.f32 32.0, %v226
        %v228 = vsub.f32 1.0, %v227
        %v229 = vmul.f32 %v226, %v228
        %v230 = vadd.f32 %v226, %v229
        %vm231 = vweird.f32 %v226
        %v232 = vsel %vm231, %v226, %v230
        %v233 = vmul.f32 %v225, %v232
        %v234 = vsub.f32 %v221, %v233
        %v235 = vmul.f32 %v234, %v234
        %v236 = vsel %vm222, %v235, 0.0
        %237 = vadd.xlane.f32.xlu0 %v236
        %v238 = vpop.xlane.xlu0 %237
        %v239 = vmul.f32 %v238, %v232
        %v240 = vadd.f32 %v239, 1e-05
        %v241 = vrsqrt.pop %v240
        %v242 = vmul.f32 %v241, %v240
        %v243 = vmul.f32 %v242, %v241
        %v244 = vmul.f32 0.5, %v243
        %v245 = vsub.f32 1.5, %v244
        %v246 = vmul.f32 %v241, %v245
        %vm247 = vweird.f32 %v240
        %vm248 = vweird.f32 %v241
        %vm249 = vmor %vm247, %vm248
        %v250 = vsel %vm249, %v241, %v246
        %v251 = vmul.f32 %v234, %v250
        %v252 = vpack.c.bf16 %v251, %v251
        %v253 = vld [vmem:[%s1] sm:$0xf]
        %v254 = vld [vmem:[%s1 + $0x4] sm:$0xf]
        %v255 = vld [vmem:[%s1 + $0x8] sm:$0xf]
        %v256 = vld [vmem:[%s1 + $0xc] sm:$0xf]
        %v257 = vld [vmem:[%s2] sm:$0x1]
        %v259 = vperm.slane %v257, 0
        %v265 = vunpack.c.l.b16 %v253
        %v266 = vunpack.c.l.b16 %v254
        %v267 = vunpack.c.l.b16 %v255
        %v268 = vunpack.c.l.b16 %v256
        %v269 = vpack.c.b16 %v266, %v265
        %v270 = vpack.c.b16 %v268, %v267
        %v274 = vsel %vm222, %v252, 0
        %276 = vmatpush.bf16.msra.mxu0 0
        %277 = vmatpush.bf16.msra.mxu0 0
        %278 = vmatpush.bf16.msra.mxu0 0
        %279 = vmatpush.bf16.msra.mxu0 0
        %280 = vmatpush.bf16.msra.mxu0 0
        %281 = vmatpush.bf16.msra.mxu0 0
        %282 = vmatpush.bf16.msra.mxu0 %v270
        %283 = vmatpush.bf16.msra.mxu0 %v269
        %284 = vmatmul.bf16.gmra.mxu0 %v274
        %v285 = vpop.f32.mrf.mxu0
        %v286 = vadd.f32 %v259, %v285
        %v287 = vpop.f32.mrf.mxu0
        %288 = vdwg.mxu0
        %v289 = vmax.f32 %v286, 0.0
        %v290 = vpack.c.bf16 %v289, %v289
        %v291 = vld [vmem:[%s3] sm:$0xf]
        %v292 = vld [vmem:[%s3 + $0x4] sm:$0xf]
        %v293 = vld [vmem:[%s3 + $0x8] sm:$0xf]
        %v294 = vld [vmem:[%s3 + $0xc] sm:$0xf]
        %v295 = vld [vmem:[%s3 + $0x10] sm:$0xf]
        %v296 = vld [vmem:[%s3 + $0x14] sm:$0xf]
        %v297 = vld [vmem:[%s3 + $0x18] sm:$0xf]
        %v298 = vld [vmem:[%s3 + $0x1c] sm:$0xf]
        %v299 = vld [vmem:[%s3 + $0x20] sm:$0xf]
        %v300 = vld [vmem:[%s3 + $0x24] sm:$0xf]
        %v301 = vld [vmem:[%s3 + $0x28] sm:$0xf]
        %v302 = vld [vmem:[%s3 + $0x2c] sm:$0xf]
        %v303 = vld [vmem:[%s3 + $0x30] sm:$0xf]
        %v304 = vld [vmem:[%s3 + $0x34] sm:$0xf]
        %v305 = vld [vmem:[%s3 + $0x38] sm:$0xf]
        %v306 = vld [vmem:[%s3 + $0x3c] sm:$0xf]
        %v323 = vunpack.c.l.b16 %v291
        %v324 = vunpack.c.l.b16 %v292
        %v325 = vunpack.c.l.b16 %v293
        %v326 = vunpack.c.l.b16 %v294
        %v327 = vunpack.c.l.b16 %v295
        %v328 = vunpack.c.l.b16 %v296
        %v329 = vunpack.c.l.b16 %v297
        %v330 = vunpack.c.l.b16 %v298
        %v331 = vunpack.c.l.b16 %v299
        %v332 = vunpack.c.l.b16 %v300
        %v333 = vunpack.c.l.b16 %v301
        %v334 = vunpack.c.l.b16 %v302
        %v335 = vunpack.c.l.b16 %v303
        %v336 = vunpack.c.l.b16 %v304
        %v337 = vunpack.c.l.b16 %v305
        %v338 = vunpack.c.l.b16 %v306
        %v339 = vpack.c.b16 %v324, %v323
        %v340 = vpack.c.b16 %v326, %v325
        %v341 = vpack.c.b16 %v328, %v327
        %v342 = vpack.c.b16 %v330, %v329
        %v343 = vpack.c.b16 %v332, %v331
        %v344 = vpack.c.b16 %v334, %v333
        %v345 = vpack.c.b16 %v336, %v335
        %v346 = vpack.c.b16 %v338, %v337
        %355 = vmatpush.bf16.msra.mxu0 %v346
        %356 = vmatpush.bf16.msra.mxu0 %v345
        %357 = vmatpush.bf16.msra.mxu0 %v344
        %358 = vmatpush.bf16.msra.mxu0 %v343
        %359 = vmatpush.bf16.msra.mxu0 %v342
        %360 = vmatpush.bf16.msra.mxu0 %v341
        %361 = vmatpush.bf16.msra.mxu0 %v340
        %362 = vmatpush.bf16.msra.mxu0 %v339
        %363 = vmatmul.bf16.gmra.mxu0 %v290
        %v364 = vpop.f32.mrf.mxu0
        %v365 = vadd.f32 0.0, %v364
        %v366 = vpop.f32.mrf.mxu0
        %367 = vdwg.mxu0
        %v368 = vadd.f32 %v221, %v365
        %v369 = vld [vmem:[%s4] sm:$0x1]
        %v371 = vperm.slane %v369, 0
        %v373 = vadd.f32 %v368, %v371
        %374 = vst.msk [vmem:[%s215] sm:$0xff] %vm222, %v373
        %s375 = sand.u32 %s137, 1
        %s376 = scalar_lea.sflag [#allocation3], %s375
        %s377 = sand.u32 %s137, 1
        %s378 = smul.addr %s377, 8
        %s379 = scalar_lea.vmem [#allocation2], %s378
        // Predicated region
        $region41: #{tpu_custom_call.1} parent=39 // pred_check
          %p380 = pneg %p147
        $region42: #{tpu_custom_call.1} parent=39 // pred_check_branch
          %382 = sbr.rel (%p380) target = $region44
        $region43: #{tpu_custom_call.1} parent=39 // pred_region
          %384 = vsyncadd %s376, 0
          %s385 = smul.addr %s19, 8
          %s386 = scalar_lea.hbm %s5, %s385
          %s388 = sshll.u32 %s379, 4
          %s389 = int_to_ptr.vmem [resolvable:$true] %s388
          %s390 = sshll.u32 %s386, 4
          %s391 = int_to_ptr.hbm [resolvable:$true] %s390
          %393 = dma.vmem_to_hbm [thread:$0]  %s389, 128, %s391, %s376
        $region44: #{tpu_custom_call.1} parent=39 // pred_fallthru
          _
      $region40: #{tpu_custom_call.1} parent=5 // pred_fallthru
        _
      %p394 = scmp.le.s32.totalorder 2, %s14
      // Predicated region
      $region45: #{tpu_custom_call.1} parent=5 // pred_check
        %p395 = pneg %p394
      $region46: #{tpu_custom_call.1} parent=5 // pred_check_branch
        %397 = sbr.rel (%p395) target = $region48
      $region47: #{tpu_custom_call.1} parent=5 // pred_region
        %s398 = ssub.s32 %s14, 2
        // Predicated region
        $region49: #{tpu_custom_call.1} parent=47 // pred_check
          %p399 = pneg %p153
        $region50: #{tpu_custom_call.1} parent=47 // pred_check_branch
          %401 = sbr.rel (%p399) target = $region52
        $region51: #{tpu_custom_call.1} parent=47 // pred_region
          %s402 = sand.u32 %s138, 1
          %s403 = scalar_lea.sflag [#allocation3], %s402
          %s404 = sand.u32 %s138, 1
          %s405 = smul.addr %s404, 8
          %s406 = scalar_lea.vmem [#allocation2], %s405
          %408 = dma.done %s403, 128
        $region52: #{tpu_custom_call.1} parent=47 // pred_fallthru
          _
      $region48: #{tpu_custom_call.1} parent=5 // pred_fallthru
        _
    $region6: #{tpu_custom_call.1} parent=1 // loop_footer
      %s18 = sadd.s32 1, %s14
    $region7: #{tpu_custom_call.1} parent=1 // loop_footer_branch
      %13 = sbr.rel target = $region3
    $region8: #{tpu_custom_call.1} parent=1 // loop_exit
      _
    %409 = vsyncpa [#allocation3], 1
    %s410 = scalar_lea.sflag [#allocation3], 1
    %411 = vsyncpa %s410, 1

</llo_original>
